<compile_context>
chip_gen: v5e
topology: v5e:2x2
jax: 0.10.0
libtpu: 0.0.40
codegen_flags: <defaults>
</compile_context>

<pallas_src>
import functools

import jax
import jax.numpy as jnp
from jax import lax
from jax.experimental import pallas as pl
from jax.experimental.pallas import tpu as pltpu

LANE = 128  # padded width of the fused head / output slab


def actor_critic_kernel(x_ref, w1_ref, b1_ref, wh_ref, bh_ref, out_ref,
                        *, state_space, action_space):
    # ----- layer 1: hidden = relu(x @ W1 + b1) -----
    if state_space <= 32:
        # K is tiny (4 for CartPole): an MXU matmul would pay full fill/drain
        # for <4% of the array depth. Do K broadcast-FMAs on the VPU instead;
        # these run on VALU slots and overlap with the head matmul's MXU work.
        # (If a bundle dump ever shows XLU/broadcast pressure here, fall back
        # to the MXU branch below -- the MXU is idle at this point anyway.)
        h = b1_ref[...]                                      # (1, H), broadcasts
        for k in range(state_space):                         # static unroll
            h = h + x_ref[:, pl.ds(k, 1)] * w1_ref[pl.ds(k, 1), :]
    else:
        h = jnp.dot(x_ref[...], w1_ref[...],
                    preferred_element_type=jnp.float32) + b1_ref[...]
    h = jnp.maximum(h, 0.0)                                  # (B_blk, H) f32

    # ----- fused actor+critic head: one lane-dense MXU matmul -----
    # lanes [0, A): actor logits, lane A: critic value, lanes > A: zero pad.
    # MXU inputs in the resident head-weight dtype (bf16 by default); the
    # accumulation and everything downstream stays f32.
    logits = jnp.dot(h.astype(wh_ref.dtype), wh_ref[...],
                     preferred_element_type=jnp.float32) + bh_ref[...]

    lane = lax.broadcasted_iota(jnp.int32, logits.shape, 1)
    actor_mask = lane < action_space

    # masked, numerically stable softmax over the actor lanes only.
    masked = jnp.where(actor_mask, logits, jnp.float32(-1e30))
    m = jnp.max(masked, axis=-1, keepdims=True)
    e = jnp.where(actor_mask, jnp.exp(masked - m), 0.0)      # no inf in pad lanes
    s = jnp.sum(e, axis=-1, keepdims=True)
    inv = pl.reciprocal(s, approx=True)                      # EUP slot
    inv = inv * (2.0 - s * inv)                              # Newton -> f32 accurate
    probs = e * inv

    # lane-dense combined output: probs in actor lanes, critic value at lane A,
    # zeros in the padded lanes (padded weight/bias columns are zero).
    out_ref[...] = jnp.where(actor_mask, probs, logits).astype(out_ref.dtype)


def pack_params(params, pad_to=LANE, head_dtype=jnp.bfloat16):
    """Pack (w1,b1,wa,ba,wc,bc) into (w1, b1, w_heads, b_heads) with the actor
    and critic heads fused and zero-padded to a lane-dense width. The fused
    head weights are stored in `head_dtype` (bf16 by default) so the resident
    VMEM tile and the MXU pushes are narrow; the biases stay f32 (added after
    the f32 accumulation). Pure host-side prep -- do it once at init."""
    w1, b1, wa, ba, wc, bc = params
    hidden = w1.shape[1]
    action_space = wa.shape[1]
    heads = action_space + 1
    assert heads <= pad_to, "action_space + 1 must fit in one 128-lane slab"
    w_heads = jnp.zeros((hidden, pad_to), jnp.float32)
    w_heads = w_heads.at[:, :action_space].set(wa)
    w_heads = w_heads.at[:, action_space:heads].set(wc)
    b_heads = jnp.zeros((1, pad_to), jnp.float32)
    b_heads = b_heads.at[:, :action_space].set(ba)
    b_heads = b_heads.at[:, action_space:heads].set(bc)
    return (w1.astype(jnp.float32), b1.astype(jnp.float32),
            w_heads.astype(head_dtype), b_heads)


def _round_up(x, m):
    return -(-x // m) * m


def _choose_block_b(batch, sublane=16):
    """Batch tile: as few grid steps as possible (per-step overhead dominates
    this kernel), but >= 2 steps for large batches so v7x's two TensorCores
    both get work; multiples of 16 keep bf16/f32 output blocks tile-aligned."""
    MAX_BLOCK_B = 4096   # (4096,128) f32 out tile ~2 MiB; well under any VMEM limit
    MIN_SPLIT = 256      # only split across >=2 grid steps when it is worthwhile
    if batch < MIN_SPLIT:
        return min(_round_up(batch, sublane), MAX_BLOCK_B)
    half = _round_up(_round_up(batch, 2) // 2, sublane)
    return min(half, MAX_BLOCK_B)


def actor_critic_forward_packed(state, packed_params, action_space,
                                out_dtype=jnp.bfloat16):
    """Runs the fused kernel and returns the packed (batch, 128) output slab:
    lanes [0, A) = softmax probs, lane A = critic value, lanes > A = 0.
    Prefer this entry point inside a larger jit and slice at the consumer so
    XLA fuses the slicing instead of re-materializing (B,128) copies."""
    w1, b1, w_heads, b_heads = packed_params
    batch, state_space = state.shape
    hidden = w1.shape[1]
    pad = w_heads.shape[1]

    block_b = _choose_block_b(batch)
    padded_batch = pl.cdiv(batch, block_b) * block_b
    if padded_batch != batch:
        # Pad rows once in the wrapper: far cheaper than the 0.35 us/step
        # overhead of a long ragged grid (e.g. batch=1000 -> 2 steps, not 125).
        state = jnp.pad(state, ((0, padded_batch - batch), (0, 0)))
    grid = (padded_batch // block_b,)

    kernel = functools.partial(actor_critic_kernel,
                               state_space=state_space,
                               action_space=action_space)

    resident = pl.Buffered(1)   # constant index_map -> no double-buffering needed

    out = pl.pallas_call(
        kernel,
        out_shape=jax.ShapeDtypeStruct((padded_batch, pad), out_dtype),
        grid_spec=pltpu.PrefetchScalarGridSpec(
            num_scalar_prefetch=0,
            grid=grid,
            in_specs=[
                # state tile marches with the batch grid
                pl.BlockSpec((block_b, state_space), lambda i: (i, 0)),
                # weights/biases stay resident in VMEM across the batch grid
                pl.BlockSpec((state_space, hidden), lambda i: (0, 0),
                             pipeline_mode=resident),
                pl.BlockSpec((1, hidden), lambda i: (0, 0),
                             pipeline_mode=resident),
                pl.BlockSpec((hidden, pad), lambda i: (0, 0),
                             pipeline_mode=resident),
                pl.BlockSpec((1, pad), lambda i: (0, 0),
                             pipeline_mode=resident),
            ],
            out_specs=pl.BlockSpec((block_b, pad), lambda i: (i, 0)),
        ),
        compiler_params=pltpu.CompilerParams(
            dimension_semantics=("parallel",)),
    )(state, w1, b1, w_heads, b_heads)

    if padded_batch != batch:
        out = out[:batch]
    return out


def actor_critic_forward(state, packed_params, action_space,
                         out_dtype=jnp.bfloat16):
    """Convenience wrapper matching the PyTorch forward: returns
    (value (B,1) f32, probs (B,action_space) f32)."""
    out = actor_critic_forward_packed(state, packed_params, action_space,
                                      out_dtype=out_dtype)
    probs = out[:, :action_space].astype(jnp.float32)
    value = out[:, action_space:action_space + 1].astype(jnp.float32)
    return value, probs


def init_params(key, state_space, action_space, hidden_size=128):
    """PyTorch-style uniform(+-1/sqrt(fan_in)) init; weights stored transposed
    as (in_features, out_features)."""
    def linear(key, fan_in, fan_out):
        kw, kb = jax.random.split(key)
        bound = 1.0 / jnp.sqrt(fan_in)
        w = jax.random.uniform(kw, (fan_in, fan_out), jnp.float32, -bound, bound)
        b = jax.random.uniform(kb, (1, fan_out), jnp.float32, -bound, bound)
        return w, b

    k1, k2, k3 = jax.random.split(key, 3)
    w1, b1 = linear(k1, state_space, hidden_size)
    wa, ba = linear(k2, hidden_size, action_space)
    wc, bc = linear(k3, hidden_size, 1)
    return (w1, b1, wa, ba, wc, bc)


if __name__ == "__main__":
    # CartPole-like shapes: 4-d state, 2 actions, hidden=128.
    state_space, action_space, hidden = 4, 2, 128

    key = jax.random.PRNGKey(0)
    k_params, k_state = jax.random.split(key)
    params = init_params(k_params, state_space, action_space, hidden)
    w1, b1, wa, ba, wc, bc = params

    def reference(s):
        h = jnp.maximum(s @ w1 + b1, 0.0)
        return h @ wc + bc, jax.nn.softmax(h @ wa + ba, axis=-1)

    # 1) exact path: f32 head matmul + f32 output slab; small odd batch
    #    exercises the row-padding path.
    packed_f32 = pack_params(params, head_dtype=jnp.float32)
    state_small = jax.random.normal(k_state, (6, state_space), jnp.float32)
    value, probs = actor_critic_forward(state_small, packed_f32, action_space,
                                        out_dtype=jnp.float32)
    jax.block_until_ready((value, probs))
    v_ref, p_ref = reference(state_small)
    assert value.shape == (6, 1) and probs.shape == (6, action_space)
    assert jnp.allclose(value, v_ref, atol=1e-5, rtol=1e-5)
    assert jnp.allclose(probs, p_ref, atol=1e-5, rtol=1e-5)

    # 2) default perf path: bf16 resident head weights (bf16 MXU inputs) and a
    #    bf16 output slab; batch=1000 exercises pad-to-tile + the 2-step
    #    "parallel" grid (both TensorCores on v7x).
    packed_bf16 = pack_params(params)            # head_dtype defaults to bf16
    state_big = jax.random.normal(jax.random.PRNGKey(1),
                                  (1000, state_space), jnp.float32)
    value, probs = actor_critic_forward(state_big, packed_bf16, action_space)
    jax.block_until_ready((value, probs))
    v_ref, p_ref = reference(state_big)
    assert value.shape == (1000, 1) and probs.shape == (1000, action_space)
    assert jnp.allclose(value, v_ref, atol=5e-2, rtol=5e-2)
    assert jnp.allclose(probs, p_ref, atol=5e-2, rtol=5e-2)
    assert jnp.allclose(jnp.sum(probs, axis=-1), 1.0, atol=5e-2)

    # TODO(synk): saved_actions/rewards bookkeeping and Categorical sampling are
    # host-side training state in the PyTorch module, not part of the forward.
    print("KERNEL_OK")
</pallas_src>

<mosaic_0001>
module attributes {stable_mosaic.version = 11 : i64} {
  func.func @actor_critic_kernel(%arg0: i32, %arg1: memref<16x4xf32, #tpu.memory_space<vmem>>, %arg2: memref<4x128xf32, #tpu.memory_space<vmem>>, %arg3: memref<1x128xf32, #tpu.memory_space<vmem>>, %arg4: memref<128x128xf32, #tpu.memory_space<vmem>>, %arg5: memref<1x128xf32, #tpu.memory_space<vmem>>, %arg6: memref<16x128xf32, #tpu.memory_space<vmem>>) attributes {dimension_semantics = [#tpu.dimension_semantics<parallel>], iteration_bounds = array<i64: 1>, scalar_prefetch = 0 : i64, scratch_operands = 0 : i64, tpu.core_type = #tpu.core_type<tc>, window_params = [{transform_indices = @transform_0, window_bounds = array<i64: 16, 4>}, {pipeline_mode = #tpu.pipeline_mode<synchronous>, transform_indices = @transform_1, window_bounds = array<i64: 4, 128>}, {pipeline_mode = #tpu.pipeline_mode<synchronous>, transform_indices = @transform_2, window_bounds = array<i64: 1, 128>}, {pipeline_mode = #tpu.pipeline_mode<synchronous>, transform_indices = @transform_3, window_bounds = array<i64: 128, 128>}, {pipeline_mode = #tpu.pipeline_mode<synchronous>, transform_indices = @transform_4, window_bounds = array<i64: 1, 128>}, {transform_indices = @transform_5, window_bounds = array<i64: 16, 128>}]} {
    %c0 = arith.constant 0 : index
    %c0_0 = arith.constant 0 : index
    %0 = vector.load %arg3[%c0, %c0_0] : memref<1x128xf32, #tpu.memory_space<vmem>>, vector<1x128xf32>
    %c0_1 = arith.constant 0 : index
    %c0_2 = arith.constant 0 : index
    %1 = vector.load %arg1[%c0_1, %c0_2] : memref<16x4xf32, #tpu.memory_space<vmem>>, vector<16x1xf32>
    %c0_3 = arith.constant 0 : index
    %c0_4 = arith.constant 0 : index
    %2 = vector.load %arg2[%c0_3, %c0_4] : memref<4x128xf32, #tpu.memory_space<vmem>>, vector<1x128xf32>
    %3 = vector.broadcast %1 : vector<16x1xf32> to vector<16x128xf32>
    %4 = vector.broadcast %2 : vector<1x128xf32> to vector<16x128xf32>
    %5 = arith.mulf %3, %4 : vector<16x128xf32>
    %6 = vector.broadcast %0 : vector<1x128xf32> to vector<16x128xf32>
    %7 = arith.addf %6, %5 : vector<16x128xf32>
    %c0_5 = arith.constant 0 : index
    %c1 = arith.constant 1 : index
    %8 = vector.load %arg1[%c0_5, %c1] : memref<16x4xf32, #tpu.memory_space<vmem>>, vector<16x1xf32>
    %c1_6 = arith.constant 1 : index
    %c0_7 = arith.constant 0 : index
    %9 = vector.load %arg2[%c1_6, %c0_7] : memref<4x128xf32, #tpu.memory_space<vmem>>, vector<1x128xf32>
    %10 = vector.broadcast %8 : vector<16x1xf32> to vector<16x128xf32>
    %11 = vector.broadcast %9 : vector<1x128xf32> to vector<16x128xf32>
    %12 = arith.mulf %10, %11 : vector<16x128xf32>
    %13 = arith.addf %7, %12 : vector<16x128xf32>
    %c0_8 = arith.constant 0 : index
    %c2 = arith.constant 2 : index
    %14 = vector.load %arg1[%c0_8, %c2] : memref<16x4xf32, #tpu.memory_space<vmem>>, vector<16x1xf32>
    %c2_9 = arith.constant 2 : index
    %c0_10 = arith.constant 0 : index
    %15 = vector.load %arg2[%c2_9, %c0_10] : memref<4x128xf32, #tpu.memory_space<vmem>>, vector<1x128xf32>
    %16 = vector.broadcast %14 : vector<16x1xf32> to vector<16x128xf32>
    %17 = vector.broadcast %15 : vector<1x128xf32> to vector<16x128xf32>
    %18 = arith.mulf %16, %17 : vector<16x128xf32>
    %19 = arith.addf %13, %18 : vector<16x128xf32>
    %c0_11 = arith.constant 0 : index
    %c3 = arith.constant 3 : index
    %20 = vector.load %arg1[%c0_11, %c3] : memref<16x4xf32, #tpu.memory_space<vmem>>, vector<16x1xf32>
    %c3_12 = arith.constant 3 : index
    %c0_13 = arith.constant 0 : index
    %21 = vector.load %arg2[%c3_12, %c0_13] : memref<4x128xf32, #tpu.memory_space<vmem>>, vector<1x128xf32>
    %22 = vector.broadcast %20 : vector<16x1xf32> to vector<16x128xf32>
    %23 = vector.broadcast %21 : vector<1x128xf32> to vector<16x128xf32>
    %24 = arith.mulf %22, %23 : vector<16x128xf32>
    %25 = arith.addf %19, %24 : vector<16x128xf32>
    %cst = arith.constant 0.000000e+00 : f32
    %26 = vector.broadcast %cst : f32 to vector<16x128xf32>
    %27 = arith.maximumf %25, %26 : vector<16x128xf32>
    %c0_14 = arith.constant 0 : index
    %c0_15 = arith.constant 0 : index
    %28 = vector.load %arg4[%c0_14, %c0_15] : memref<128x128xf32, #tpu.memory_space<vmem>>, vector<128x128xf32>
    %cst_16 = arith.constant dense<0.000000e+00> : vector<16x128xf32>
    %29 = tpu.matmul %27, %28, %cst_16 {dimension_numbers = #tpu.dot_dimension_numbers<[1], [0], [0], [1], [0, 0, 1, 1], [], []>} : vector<16x128xf32>, vector<128x128xf32>, vector<16x128xf32> -> vector<16x128xf32>
    %c0_17 = arith.constant 0 : index
    %c0_18 = arith.constant 0 : index
    %30 = vector.load %arg5[%c0_17, %c0_18] : memref<1x128xf32, #tpu.memory_space<vmem>>, vector<1x128xf32>
    %31 = vector.broadcast %30 : vector<1x128xf32> to vector<16x128xf32>
    %32 = arith.addf %29, %31 : vector<16x128xf32>
    %33 = tpu.iota {dimensions = array<i32: 1>} : vector<16x128xi32>
    %c2_i32 = arith.constant 2 : i32
    %34 = vector.broadcast %c2_i32 : i32 to vector<16x128xi32>
    %35 = arith.cmpi slt, %33, %34 : vector<16x128xi32>
    %cst_19 = arith.constant -1.000000e+30 : f32
    %36 = vector.broadcast %cst_19 : f32 to vector<16x128xf32>
    %37 = arith.select %35, %32, %36 : vector<16x128xi1>, vector<16x128xf32>
    %cst_20 = arith.constant dense<0xFF800000> : vector<16xf32>
    %38 = vector.multi_reduction <maximumf>, %37, %cst_20 [1] : vector<16x128xf32> to vector<16xf32>
    %39 = vector.shape_cast %38 : vector<16xf32> to vector<16x1xf32>
    %40 = vector.broadcast %39 : vector<16x1xf32> to vector<16x128xf32>
    %41 = arith.subf %37, %40 : vector<16x128xf32>
    %42 = math.exp %41 : vector<16x128xf32>
    %cst_21 = arith.constant 0.000000e+00 : f32
    %43 = vector.broadcast %cst_21 : f32 to vector<16x128xf32>
    %44 = arith.select %35, %42, %43 : vector<16x128xi1>, vector<16x128xf32>
    %cst_22 = arith.constant dense<0.000000e+00> : vector<16xf32>
    %45 = vector.multi_reduction <add>, %44, %cst_22 [1] : vector<16x128xf32> to vector<16xf32>
    %46 = vector.shape_cast %45 : vector<16xf32> to vector<16x1xf32>
    %47 = tpu.reciprocal %46 {approx = true} : vector<16x1xf32> -> vector<16x1xf32>
    %48 = arith.mulf %46, %47 : vector<16x1xf32>
    %cst_23 = arith.constant 2.000000e+00 : f32
    %49 = vector.broadcast %cst_23 : f32 to vector<16x1xf32>
    %50 = arith.subf %49, %48 : vector<16x1xf32>
    %51 = arith.mulf %47, %50 : vector<16x1xf32>
    %52 = vector.broadcast %51 : vector<16x1xf32> to vector<16x128xf32>
    %53 = arith.mulf %44, %52 : vector<16x128xf32>
    %54 = arith.select %35, %53, %32 : vector<16x128xi1>, vector<16x128xf32>
    %c0_24 = arith.constant 0 : index
    %c0_25 = arith.constant 0 : index
    %55 = vector.load %arg6[%c0_24, %c0_25] : memref<16x128xf32, #tpu.memory_space<vmem>>, vector<16x128xf32>
    tpu.vector_store %arg6[%c0_24, %c0_25], %54 {strides = array<i32>} : memref<16x128xf32, #tpu.memory_space<vmem>>, vector<16x128xf32>,
    return
  }
  func.func @transform_0(%arg0: i32) -> (i32, i32) {
    %c0_i32 = arith.constant 0 : i32
    %c0_i32_0 = arith.constant 0 : i32
    return %arg0, %c0_i32 : i32, i32
  }
  func.func @transform_1(%arg0: i32) -> (i32, i32) {
    %c0_i32 = arith.constant 0 : i32
    %c0_i32_0 = arith.constant 0 : i32
    %c0_i32_1 = arith.constant 0 : i32
    return %c0_i32, %c0_i32_0 : i32, i32
  }
  func.func @transform_2(%arg0: i32) -> (i32, i32) {
    %c0_i32 = arith.constant 0 : i32
    %c0_i32_0 = arith.constant 0 : i32
    %c0_i32_1 = arith.constant 0 : i32
    return %c0_i32, %c0_i32_0 : i32, i32
  }
  func.func @transform_3(%arg0: i32) -> (i32, i32) {
    %c0_i32 = arith.constant 0 : i32
    %c0_i32_0 = arith.constant 0 : i32
    %c0_i32_1 = arith.constant 0 : i32
    return %c0_i32, %c0_i32_0 : i32, i32
  }
  func.func @transform_4(%arg0: i32) -> (i32, i32) {
    %c0_i32 = arith.constant 0 : i32
    %c0_i32_0 = arith.constant 0 : i32
    %c0_i32_1 = arith.constant 0 : i32
    return %c0_i32, %c0_i32_0 : i32, i32
  }
  func.func @transform_5(%arg0: i32) -> (i32, i32) {
    %c0_i32 = arith.constant 0 : i32
    %c0_i32_0 = arith.constant 0 : i32
    return %arg0, %c0_i32 : i32, i32
  }
}

</mosaic_0001>

<llo_original>
// kernel: tpu_custom_call.1
$region0: #{tpu_custom_call.1}
  #allocation0 [shape = 'u32[]', space=smem, size = 0x4, offset = 0x4, fixed_abs, tag = 'smem constant byte address 0x4 - core index']
  #allocation1 [shape = 'u32[72,128]{1,0:T(1,128)}', space=vmem, size = 0x9000, scoped, tag = 'internal scratch']
  %s0 = inlined_call_operand.vmem [shape: f32[16,4], index: 0, kind: input, shape index: {}]
  %s1 = inlined_call_operand.vmem [shape: f32[4,128], index: 1, kind: input, shape index: {}]
  %s2 = inlined_call_operand.vmem [shape: f32[1,128], index: 2, kind: input, shape index: {}]
  %s3 = inlined_call_operand.hbm [shape: f32[128,128], index: 3, kind: input, shape index: {}]
  %s4 = inlined_call_operand.vmem [shape: f32[1,128], index: 4, kind: input, shape index: {}]
  %s5 = inlined_call_operand.hbm [shape: f32[16,128], index: 5, kind: output, shape index: {}]
  %s6 = sld [smem:[#allocation0]]
  $region34: #{tpu_custom_call.1} parent=0
    _
  %s8 = ssub.s32 1, %s6
  %s9 = scalar_select 0, %s8, %s6
  $region1: #{tpu_custom_call.1} parent=0
    #allocation2 [shape = 'u8[65536]{0}', space=vmem, size = 0x10000, scoped, tag = 'input window, operand 3, single buffered']
    #allocation3 [shape = 's32[1]{0}', space=sflag, size = 0x4, scoped, tag = 'scoped memory for tpu_custom_call.1']
    #allocation4 [shape = 's32[1]{0}', space=sflag, size = 0x4, scoped, tag = 'scoped memory for tpu_custom_call.1']
    #allocation5 [shape = 'u8[8192]{0}', space=vmem, size = 0x2000, scoped, tag = 'output window, operand 0, single buffered']
    %10 = vsyncpa [#allocation3], 0
    %11 = vsyncpa [#allocation4], 0
    // Predicated region
    $region2: #{tpu_custom_call.1} parent=1 // pred_check
      _
    $region3: #{tpu_custom_call.1} parent=1 // pred_check_branch
      %13 = sbr.rel (0) target = $region5
    $region4: #{tpu_custom_call.1} parent=1 // pred_region
      _
    $region5: #{tpu_custom_call.1} parent=1 // pred_fallthru
      _
    // Predicated region
    $region6: #{tpu_custom_call.1} parent=1 // pred_check
      _
    $region7: #{tpu_custom_call.1} parent=1 // pred_check_branch
      %15 = sbr.rel (0) target = $region9
    $region8: #{tpu_custom_call.1} parent=1 // pred_region
      _
    $region9: #{tpu_custom_call.1} parent=1 // pred_fallthru
      _
    // Predicated region
    $region10: #{tpu_custom_call.1} parent=1 // pred_check
      _
    $region11: #{tpu_custom_call.1} parent=1 // pred_check_branch
      %17 = sbr.rel (0) target = $region13
    $region12: #{tpu_custom_call.1} parent=1 // pred_region
      _
    $region13: #{tpu_custom_call.1} parent=1 // pred_fallthru
      _
    // Predicated region
    $region14: #{tpu_custom_call.1} parent=1 // pred_check
      _
    $region15: #{tpu_custom_call.1} parent=1 // pred_check_branch
      %19 = sbr.rel (0) target = $region17
    $region16: #{tpu_custom_call.1} parent=1 // pred_region
      %21 = vsyncadd [#allocation3], 0
      %s22 = sshll.u32 %s3, 4
      %s23 = int_to_ptr.hbm [resolvable:$true] %s22
      %s24 = sshll.u32 [#allocation2], 4
      %s25 = int_to_ptr.vmem [resolvable:$true] %s24
      %30 = dma.hbm_to_vmem [thread:$0]  %s23, 2048, %s25, [#allocation3], 128, 128, 8
    $region17: #{tpu_custom_call.1} parent=1 // pred_fallthru
      _
    // Predicated region
    $region18: #{tpu_custom_call.1} parent=1 // pred_check
      _
    $region19: #{tpu_custom_call.1} parent=1 // pred_check_branch
      %32 = sbr.rel (0) target = $region21
    $region20: #{tpu_custom_call.1} parent=1 // pred_region
      _
    $region21: #{tpu_custom_call.1} parent=1 // pred_fallthru
      _
    // Predicated region
    $region22: #{tpu_custom_call.1} parent=1 // pred_check
      _
    $region23: #{tpu_custom_call.1} parent=1 // pred_check_branch
      %34 = sbr.rel (0) target = $region25
    $region24: #{tpu_custom_call.1} parent=1 // pred_region
      %36 = dma.done [#allocation3], 2048
    $region25: #{tpu_custom_call.1} parent=1 // pred_fallthru
      _
    %v37 = vld [vmem:[%s2] sm:$0x1]
    %v38 = vld [vmem:[%s0] sm:$0xff]
    %v39 = vld [vmem:[%s0 + $0x8] sm:$0xff]
    %v40 = vld [vmem:[%s1] sm:$0x1]
    %42 = vset.pattern.permute.xlu0 0
    %43 = vperm.xlu0 %42, %v38
    %v44 = vpop.permute.xlu0 %43
    %47 = vset.pattern.permute.xlu0 0
    %48 = vperm.xlu0 %47, %v39
    %v49 = vpop.permute.xlu0 %48
    %v51 = vperm.slane %v40, 0
    %v52 = vmul.f32 %v44, %v51
    %v53 = vmul.f32 %v49, %v51
    %v55 = vperm.slane %v37, 0
    %v57 = vadd.f32 %v55, %v52
    %v58 = vadd.f32 %v55, %v53
    %v59 = vld [vmem:[%s1 + $0x1] sm:$0x1]
    %60 = vset.pattern.permute.xlu0 1
    %61 = vperm.xlu0 %60, %v38
    %v62 = vpop.permute.xlu0 %61
    %64 = vset.pattern.permute.xlu0 1
    %65 = vperm.xlu0 %64, %v39
    %v66 = vpop.permute.xlu0 %65
    %v68 = vperm.slane %v59, 0
    %v69 = vmul.f32 %v62, %v68
    %v70 = vmul.f32 %v66, %v68
    %v71 = vadd.f32 %v57, %v69
    %v72 = vadd.f32 %v58, %v70
    %v73 = vld [vmem:[%s1 + $0x2] sm:$0x1]
    %74 = vset.pattern.permute.xlu0 2
    %75 = vperm.xlu0 %74, %v38
    %v76 = vpop.permute.xlu0 %75
    %78 = vset.pattern.permute.xlu0 2
    %79 = vperm.xlu0 %78, %v39
    %v80 = vpop.permute.xlu0 %79
    %v82 = vperm.slane %v73, 0
    %v83 = vmul.f32 %v76, %v82
    %v84 = vmul.f32 %v80, %v82
    %v85 = vadd.f32 %v71, %v83
    %v86 = vadd.f32 %v72, %v84
    %v87 = vld [vmem:[%s1 + $0x3] sm:$0x1]
    %88 = vset.pattern.permute.xlu0 3
    %89 = vperm.xlu0 %88, %v38
    %v90 = vpop.permute.xlu0 %89
    %92 = vset.pattern.permute.xlu0 3
    %93 = vperm.xlu0 %92, %v39
    %v94 = vpop.permute.xlu0 %93
    %v96 = vperm.slane %v87, 0
    %v97 = vmul.f32 %v90, %v96
    %v98 = vmul.f32 %v94, %v96
    %v99 = vadd.f32 %v85, %v97
    %v100 = vadd.f32 %v86, %v98
    %v101 = vmax.f32 %v99, 0.0
    %v102 = vmax.f32 %v100, 0.0
    %v103 = vld [vmem:[#allocation2] sm:$0xff]
    %v104 = vld [vmem:[#allocation2 + $0x8] sm:$0xff]
    %v105 = vld [vmem:[#allocation2 + $0x10] sm:$0xff]
    %v106 = vld [vmem:[#allocation2 + $0x18] sm:$0xff]
    %v107 = vld [vmem:[#allocation2 + $0x20] sm:$0xff]
    %v108 = vld [vmem:[#allocation2 + $0x28] sm:$0xff]
    %v109 = vld [vmem:[#allocation2 + $0x30] sm:$0xff]
    %v110 = vld [vmem:[#allocation2 + $0x38] sm:$0xff]
    %v111 = vld [vmem:[#allocation2 + $0x40] sm:$0xff]
    %v112 = vld [vmem:[#allocation2 + $0x48] sm:$0xff]
    %v113 = vld [vmem:[#allocation2 + $0x50] sm:$0xff]
    %v114 = vld [vmem:[#allocation2 + $0x58] sm:$0xff]
    %v115 = vld [vmem:[#allocation2 + $0x60] sm:$0xff]
    %v116 = vld [vmem:[#allocation2 + $0x68] sm:$0xff]
    %v117 = vld [vmem:[#allocation2 + $0x70] sm:$0xff]
    %v118 = vld [vmem:[#allocation2 + $0x78] sm:$0xff]
    %v119 = vld [vmem:[%s4] sm:$0x1]
    %v121 = vperm.slane %v119, 0
    %123 = vmatpush.msra.mxu0 %v118
    %124 = vmatpush.msra.mxu0 %v117
    %125 = vmatpush.msra.mxu0 %v116
    %126 = vmatpush.msra.mxu0 %v115
    %127 = vmatpush.msra.mxu0 %v114
    %128 = vmatpush.msra.mxu0 %v113
    %129 = vmatpush.msra.mxu0 %v112
    %130 = vmatpush.msra.mxu0 %v111
    %131 = vmatpush.msra.mxu0 %v110
    %132 = vmatpush.msra.mxu0 %v109
    %133 = vmatpush.msra.mxu0 %v108
    %134 = vmatpush.msra.mxu0 %v107
    %135 = vmatpush.msra.mxu0 %v106
    %136 = vmatpush.msra.mxu0 %v105
    %137 = vmatpush.msra.mxu0 %v104
    %138 = vmatpush.msra.mxu0 %v103
    %139 = vmatmul.f32.gmra.mxu0 %v101
    %v140 = vpop.f32.mrf.mxu0
    %v141 = vadd.f32 %v121, %v140
    %142 = vmatmul.f32.gmra.mxu0 %v102
    %v143 = vpop.f32.mrf.mxu0
    %v144 = vadd.f32 %v121, %v143
    %145 = vdwg.mxu0
    %v146 = vlaneseq
    %v147 = vand.u32 %v146, 127
    %vm148 = vcmp.lt.s32.totalorder %v147, 2
    %v149 = vsel %vm148, %v141, -1e+30
    %v150 = vsel %vm148, %v144, -1e+30
    %151 = vmax.xlane.f32.xlu0 %v149
    %v152 = vpop.xlane.xlu0 %151
    %153 = vmax.xlane.f32.xlu0 %v150
    %v154 = vpop.xlane.xlu0 %153
    %v155 = vsub.f32 %v149, %v152
    %v156 = vsub.f32 %v150, %v154
    %v157 = vmul.f32 %v155, 1.442695
    %v158 = vpow.pop %v157
    %v159 = vmul.f32 %v156, 1.442695
    %v160 = vpow.pop %v159
    %v161 = vsel %vm148, %v158, 0.0
    %v162 = vsel %vm148, %v160, 0.0
    %163 = vadd.xlane.f32.xlu0 %v161
    %v164 = vpop.xlane.xlu0 %163
    %165 = vadd.xlane.f32.xlu0 %v162
    %v166 = vpop.xlane.xlu0 %165
    %v167 = vrcp.pop %v164
    %v168 = vrcp.pop %v166
    %v169 = vmul.f32 %v164, %v167
    %v170 = vmul.f32 %v166, %v168
    %v171 = vsub.f32 2.0, %v169
    %v172 = vsub.f32 2.0, %v170
    %v173 = vmul.f32 %v167, %v171
    %v174 = vmul.f32 %v168, %v172
    %v175 = vmul.f32 %v161, %v173
    %v176 = vmul.f32 %v162, %v174
    %v177 = vsel %vm148, %v175, %v141
    %v178 = vsel %vm148, %v176, %v144
    %179 = vst [vmem:[#allocation5] sm:$0xff] %v177
    %180 = vst [vmem:[#allocation5 + $0x8] sm:$0xff] %v178
    // Predicated region
    $region26: #{tpu_custom_call.1} parent=1 // pred_check
      _
    $region27: #{tpu_custom_call.1} parent=1 // pred_check_branch
      %182 = sbr.rel (0) target = $region29
    $region28: #{tpu_custom_call.1} parent=1 // pred_region
      %184 = vsyncadd [#allocation4], 0
      %s185 = sshll.u32 [#allocation5], 4
      %s186 = int_to_ptr.vmem [resolvable:$true] %s185
      %s187 = sshll.u32 %s5, 4
      %s188 = int_to_ptr.hbm [resolvable:$true] %s187
      %193 = dma.vmem_to_hbm [thread:$0]  %s186, 256, %s188, [#allocation4], 128, 128, 8
    $region29: #{tpu_custom_call.1} parent=1 // pred_fallthru
      _
    // Predicated region
    $region30: #{tpu_custom_call.1} parent=1 // pred_check
      _
    $region31: #{tpu_custom_call.1} parent=1 // pred_check_branch
      %195 = sbr.rel (0) target = $region33
    $region32: #{tpu_custom_call.1} parent=1 // pred_region
      %197 = dma.done [#allocation4], 256
    $region33: #{tpu_custom_call.1} parent=1 // pred_fallthru
      _
    %198 = vsyncpa [#allocation3], 1
    %199 = vsyncpa [#allocation4], 1

</llo_original>
